<compile_context>
chip_gen: v7x
topology: tpu7x:2x2x1
jax: 0.10.0
libtpu: 0.0.40
codegen_flags: <defaults>
</compile_context>

<pallas_src>
import functools

import jax
import jax.numpy as jnp
from jax import lax
from jax.experimental import pallas as pl
from jax.experimental.pallas import tpu as pltpu


def _fractal_kernel(xy_ref, sps_ref, dir_ref, lr_ref, wlr_ref, out_ref,
                    *, max_depth, temperature, num_values):
    V = num_values
    C = wlr_ref.shape[0] - 1

    xy = xy_ref[...]                        # (2, TB)  row 0 = x, row 1 = y
    inv_t = jnp.float32(1.0 / temperature)
    x = xy[0:1, :] * inv_t                  # (1, TB)  scaled once per tile
    y = xy[1:2, :] * inv_t
    sps = sps_ref[...]                      # (V, 1)   split_points / T (pre-scaled)
    sdir = dir_ref[...]                     # (V, 1)   sigmoid(split_direction_logits)
    lr = lr_ref[...]                        # (V+1, 2V) [lc^T | rc^T ; column-sum row]
    wlr = wlr_ref[...]                      # (C+1, 2V) [w^T @ [lc^T|rc^T] ; column-sum row]

    # Soft left-split probability per (node, point).  Blend written as
    # h + d*(v - h) (one multiply fewer than (1-d)*h + d*v).
    h_left = jax.nn.sigmoid(sps - x)                       # (V, TB)
    v_left = jax.nn.sigmoid(sps - y)                       # (V, TB)
    l_mat = h_left + sdir * (v_left - h_left)              # (V, TB)
    l0 = l_mat[0:1, :]                                     # (1, TB)

    # TODO(synk): the PyTorch per-node skip (max prob < 1e-10) is data-dependent
    # control flow and is omitted; it only skips numerically-zero contributions.

    if max_depth == 1:
        # Depth 0 is also the last depth: fused class epilogue directly from e0.
        col_l = wlr[:, 0:1]                                # (C+1, 1)
        col_r = wlr[:, V:V + 1]                            # (C+1, 1)
        out_aug = col_r + (col_l - col_r) * l0             # (C+1, TB)
    else:
        # --- depth 0 peeled: node_probs = e0  =>  rank-1 update, no matmul ---
        col_l = lr[:, 0:1]                                 # (V+1, 1)
        col_r = lr[:, V:V + 1]                             # (V+1, 1)
        nxt_aug = col_r + (col_l - col_r) * l0             # (V+1, TB); row V = col sum
        s = jnp.maximum(nxt_aug[V:V + 1, :], 1e-10)
        node_probs = nxt_aug[:V, :] * pl.reciprocal(s, approx=False)

        # --- middle depths: fused K = 2V matmul, sum via the extra MXU row ---
        def body(_, np_):
            npl = np_ * l_mat                              # (V, TB)
            npr = np_ - npl                                # = np_ * (1 - l_mat)
            stacked = jnp.concatenate([npl, npr], axis=0)  # (2V, TB)
            nxt_aug = jnp.dot(lr, stacked,
                              preferred_element_type=jnp.float32)  # (V+1, TB)
            s = jnp.maximum(nxt_aug[V:V + 1, :], 1e-10)
            return nxt_aug[:V, :] * pl.reciprocal(s, approx=False)

        if max_depth > 2:
            node_probs = lax.fori_loop(0, max_depth - 2, body, node_probs,
                                       unroll=True)

        # --- last depth fused with the class matmul (wlr = w^T @ [lc^T|rc^T]) ---
        npl = node_probs * l_mat
        npr = node_probs - npl
        stacked = jnp.concatenate([npl, npr], axis=0)      # (2V, TB)
        out_aug = jnp.dot(wlr, stacked,
                          preferred_element_type=jnp.float32)      # (C+1, TB)

    # Per-column normalization commutes with the (C,V) class matmul.
    s_last = jnp.maximum(out_aug[C:C + 1, :], 1e-10)
    out_ref[...] = out_aug[:C, :] * pl.reciprocal(s_last, approx=False)


def _round_up(n, m):
    return ((n + m - 1) // m) * m


_SINGLE_STEP_CAP = 2048   # one grid step up to here (vreg-pressure bound)
_MULTI_STEP_TB = 1024     # per-step lane tile for large point grids


def _choose_tiling(num_points):
    """Return (tb, b_pad): lane tile and padded point count."""
    b128 = _round_up(max(num_points, 1), 128)
    if b128 <= _SINGLE_STEP_CAP:
        return b128, b128          # single grid step (best for v5e/v6e)
    tb = _MULTI_STEP_TB
    b_pad = _round_up(num_points, tb)
    if (b_pad // tb) % 2 == 1:     # even-length parallel grid (v7x megacore)
        b_pad += tb
    return tb, b_pad


def fractal2d_forward_pallas(xy, split_points, split_dir, lc, rc, class_w,
                             *, max_depth, temperature):
    """xy: (2, B) f32; split_points/split_dir: (V,); lc/rc: (V, V); class_w: (V, C).

    Returns lane-dense soft class probabilities of shape (C, B).
    """
    B = xy.shape[1]
    V = split_points.shape[0]
    C = class_w.shape[1]

    if max_depth == 0:
        # node_probs stays e0 for every point -> every point gets class row 0.
        return jnp.broadcast_to(class_w[0].astype(jnp.float32)[:, None], (C, B))

    tb, b_pad = _choose_tiling(B)
    if b_pad != B:
        xy = jnp.pad(xy, ((0, 0), (0, b_pad - B)))

    sps = (split_points.astype(jnp.float32) / temperature).reshape(V, 1)
    dirs = split_dir.astype(jnp.float32).reshape(V, 1)

    lr_base = jnp.concatenate([lc.T, rc.T], axis=1).astype(jnp.float32)   # (V, 2V)
    sum_row = jnp.sum(lr_base, axis=0, keepdims=True)                     # (1, 2V)
    lr_aug = jnp.concatenate([lr_base, sum_row], axis=0)                  # (V+1, 2V)
    wlr = class_w.T.astype(jnp.float32) @ lr_base                         # (C, 2V)
    wlr_aug = jnp.concatenate([wlr, sum_row], axis=0)                     # (C+1, 2V)

    kernel = functools.partial(_fractal_kernel, max_depth=int(max_depth),
                               temperature=float(temperature), num_values=V)

    out = pl.pallas_call(
        kernel,
        out_shape=jax.ShapeDtypeStruct((C, b_pad), jnp.float32),
        grid_spec=pltpu.PrefetchScalarGridSpec(
            num_scalar_prefetch=0,
            grid=(b_pad // tb,),
            in_specs=[
                pl.BlockSpec((2, tb), lambda i: (0, i)),           # packed x/y
                pl.BlockSpec((V, 1), lambda i: (0, 0)),            # split points / T
                pl.BlockSpec((V, 1), lambda i: (0, 0)),            # split directions
                pl.BlockSpec((V + 1, 2 * V), lambda i: (0, 0)),    # [lc^T|rc^T ; sum row]
                pl.BlockSpec((C + 1, 2 * V), lambda i: (0, 0)),    # [w^T@lr ; sum row]
            ],
            out_specs=pl.BlockSpec((C, tb), lambda i: (0, i)),     # lane-dense output
        ),
        compiler_params=pltpu.CompilerParams(
            dimension_semantics=("parallel",)),
    )(xy, sps, dirs, lr_aug, wlr_aug)

    return out[:, :B]   # (C, B), lane-dense; caller decides on the transpose


class Fractal2DDiffJAX:
    """JAX port of the PyTorch Fractal2DDiff module (deterministic init)."""

    def __init__(self, num_classes, num_values, num_points_x, num_points_y, key):
        self.num_classes = num_classes
        self.num_values = num_values
        self.num_points_x = num_points_x
        self.num_points_y = num_points_y

        k1, k2, k3, k4 = jax.random.split(key, 4)
        # torch.rand(V) * 0.6 + 0.2
        self.split_points = jax.random.uniform(k1, (num_values,), jnp.float32) * 0.6 + 0.2
        # torch.randn(...)
        self.split_directions_logits = jax.random.normal(k2, (num_values,), jnp.float32)
        self.class_logits = jax.random.normal(k3, (num_values, num_classes), jnp.float32)
        self.child_selection_logits = jax.random.normal(
            k4, (num_values, 2, num_values), jnp.float32)

        x = jnp.linspace(0.0, 1.0, num_points_x, dtype=jnp.float32)
        y = jnp.linspace(0.0, 1.0, num_points_y, dtype=jnp.float32)
        gx, gy = jnp.meshgrid(x, y, indexing="ij")
        # Packed lane-dense coordinates: (2, B) with row 0 = x, row 1 = y.
        self.xy = jnp.stack([gx.reshape(-1), gy.reshape(-1)], axis=0)

    def _derived_params(self, temperature):
        sdir = jax.nn.sigmoid(self.split_directions_logits)
        lc = jax.nn.softmax(self.child_selection_logits[:, 0, :] / temperature, axis=1)
        rc = jax.nn.softmax(self.child_selection_logits[:, 1, :] / temperature, axis=1)
        w = jax.nn.softmax(self.class_logits, axis=1)   # no temperature, as in PyTorch
        return sdir, lc, rc, w

    def forward(self, max_depth, temperature=1.0, hard=False):
        sdir, lc, rc, w = self._derived_params(temperature)
        out_cb = fractal2d_forward_pallas(
            self.xy, self.split_points, sdir, lc, rc, w,
            max_depth=max_depth, temperature=temperature)          # (C, B)
        if hard:
            # argmax over the class axis of the lane-dense output: no transpose.
            return jnp.argmax(out_cb, axis=0).reshape(
                self.num_points_x, self.num_points_y)
        return out_cb.T.reshape(self.num_points_x, self.num_points_y,
                                self.num_classes)

    def forward_ref(self, max_depth, temperature=1.0):
        """Pure-JAX reference (vectorized version of the PyTorch loops)."""
        sdir, lc, rc, w = self._derived_params(temperature)
        x = self.xy[0]
        y = self.xy[1]
        sp = self.split_points
        h = jax.nn.sigmoid((sp[None, :] - x[:, None]) / temperature)
        v = jax.nn.sigmoid((sp[None, :] - y[:, None]) / temperature)
        L = (1.0 - sdir)[None, :] * h + sdir[None, :] * v
        R = 1.0 - L
        B = x.shape[0]
        npb = jnp.zeros((B, self.num_values), jnp.float32).at[:, 0].set(1.0)
        for _ in range(max_depth):
            nxt = (npb * L) @ lc + (npb * R) @ rc
            npb = nxt / jnp.maximum(nxt.sum(axis=1, keepdims=True), 1e-10)
        return (npb @ w).reshape(self.num_points_x, self.num_points_y, self.num_classes)


if __name__ == "__main__":
    key = jax.random.PRNGKey(0)
    num_classes = 4
    num_values = 8
    num_points_x = 16
    num_points_y = 16
    temperature = 0.5

    model = Fractal2DDiffJAX(num_classes, num_values, num_points_x, num_points_y, key)

    # Validate all peeled/fused code paths (depth 1, 2, 3) against the reference.
    for max_depth in (1, 2, 3):
        out = jax.block_until_ready(
            model.forward(max_depth, temperature=temperature, hard=False))
        assert out.shape == (num_points_x, num_points_y, num_classes)
        ref = jax.block_until_ready(
            model.forward_ref(max_depth, temperature=temperature))
        assert jnp.allclose(out, ref, rtol=1e-5, atol=1e-5), \
            f"Pallas output mismatch vs reference at depth {max_depth}"

    # hard path (argmax over the lane-dense (C, B) kernel output, no transpose)
    hard_out = jax.block_until_ready(model.forward(3, temperature=temperature, hard=True))
    assert hard_out.shape == (num_points_x, num_points_y)

    print("KERNEL_OK")
</pallas_src>

<mosaic_0001>
module attributes {stable_mosaic.version = 11 : i64} {
  func.func @_fractal_kernel(%arg0: i32, %arg1: memref<2x256xf32, #tpu.memory_space<vmem>>, %arg2: memref<8x1xf32, #tpu.memory_space<vmem>>, %arg3: memref<8x1xf32, #tpu.memory_space<vmem>>, %arg4: memref<9x16xf32, #tpu.memory_space<vmem>>, %arg5: memref<5x16xf32, #tpu.memory_space<vmem>>, %arg6: memref<4x256xf32, #tpu.memory_space<vmem>>) attributes {dimension_semantics = [#tpu.dimension_semantics<parallel>], iteration_bounds = array<i64: 1>, scalar_prefetch = 0 : i64, scratch_operands = 0 : i64, tpu.core_type = #tpu.core_type<tc>, window_params = [{transform_indices = @transform_0, window_bounds = array<i64: 2, 256>}, {pipeline_mode = #tpu.pipeline_mode<synchronous>, transform_indices = @transform_1, window_bounds = array<i64: 8, 1>}, {pipeline_mode = #tpu.pipeline_mode<synchronous>, transform_indices = @transform_2, window_bounds = array<i64: 8, 1>}, {pipeline_mode = #tpu.pipeline_mode<synchronous>, transform_indices = @transform_3, window_bounds = array<i64: 9, 16>}, {pipeline_mode = #tpu.pipeline_mode<synchronous>, transform_indices = @transform_4, window_bounds = array<i64: 5, 16>}, {transform_indices = @transform_5, window_bounds = array<i64: 4, 256>}]} {
    %c0 = arith.constant 0 : index
    %c0_0 = arith.constant 0 : index
    %0 = vector.load %arg1[%c0, %c0_0] : memref<2x256xf32, #tpu.memory_space<vmem>>, vector<2x256xf32>
    %1 = vector.extract_strided_slice %0 {offsets = [0, 0], sizes = [1, 256], strides = [1, 1]} : vector<2x256xf32> to vector<1x256xf32>
    %cst = arith.constant 2.000000e+00 : f32
    %2 = vector.broadcast %cst : f32 to vector<1x256xf32>
    %3 = arith.mulf %1, %2 : vector<1x256xf32>
    %4 = vector.extract_strided_slice %0 {offsets = [1, 0], sizes = [1, 256], strides = [1, 1]} : vector<2x256xf32> to vector<1x256xf32>
    %cst_1 = arith.constant 2.000000e+00 : f32
    %5 = vector.broadcast %cst_1 : f32 to vector<1x256xf32>
    %6 = arith.mulf %4, %5 : vector<1x256xf32>
    %c0_2 = arith.constant 0 : index
    %c0_3 = arith.constant 0 : index
    %7 = vector.load %arg2[%c0_2, %c0_3] : memref<8x1xf32, #tpu.memory_space<vmem>>, vector<8x1xf32>
    %c0_4 = arith.constant 0 : index
    %c0_5 = arith.constant 0 : index
    %8 = vector.load %arg3[%c0_4, %c0_5] : memref<8x1xf32, #tpu.memory_space<vmem>>, vector<8x1xf32>
    %c0_6 = arith.constant 0 : index
    %c0_7 = arith.constant 0 : index
    %9 = vector.load %arg5[%c0_6, %c0_7] : memref<5x16xf32, #tpu.memory_space<vmem>>, vector<5x16xf32>
    %10 = vector.broadcast %7 : vector<8x1xf32> to vector<8x256xf32>
    %11 = vector.broadcast %3 : vector<1x256xf32> to vector<8x256xf32>
    %12 = arith.subf %10, %11 : vector<8x256xf32>
    %13 = arith.negf %12 : vector<8x256xf32>
    %14 = math.exp %13 : vector<8x256xf32>
    %cst_8 = arith.constant 1.000000e+00 : f32
    %15 = vector.broadcast %cst_8 : f32 to vector<8x256xf32>
    %16 = arith.addf %15, %14 : vector<8x256xf32>
    %17 = arith.divf %15, %16 : vector<8x256xf32>
    %18 = vector.broadcast %7 : vector<8x1xf32> to vector<8x256xf32>
    %19 = vector.broadcast %6 : vector<1x256xf32> to vector<8x256xf32>
    %20 = arith.subf %18, %19 : vector<8x256xf32>
    %21 = arith.negf %20 : vector<8x256xf32>
    %22 = math.exp %21 : vector<8x256xf32>
    %cst_9 = arith.constant 1.000000e+00 : f32
    %23 = vector.broadcast %cst_9 : f32 to vector<8x256xf32>
    %24 = arith.addf %23, %22 : vector<8x256xf32>
    %25 = arith.divf %23, %24 : vector<8x256xf32>
    %26 = arith.subf %25, %17 : vector<8x256xf32>
    %27 = vector.broadcast %8 : vector<8x1xf32> to vector<8x256xf32>
    %28 = arith.mulf %27, %26 : vector<8x256xf32>
    %29 = arith.addf %17, %28 : vector<8x256xf32>
    %30 = vector.extract_strided_slice %29 {offsets = [0, 0], sizes = [1, 256], strides = [1, 1]} : vector<8x256xf32> to vector<1x256xf32>
    %31 = vector.extract_strided_slice %9 {offsets = [0, 0], sizes = [5, 1], strides = [1, 1]} : vector<5x16xf32> to vector<5x1xf32>
    %32 = vector.extract_strided_slice %9 {offsets = [0, 8], sizes = [5, 1], strides = [1, 1]} : vector<5x16xf32> to vector<5x1xf32>
    %33 = arith.subf %31, %32 : vector<5x1xf32>
    %34 = vector.broadcast %33 : vector<5x1xf32> to vector<5x256xf32>
    %35 = vector.broadcast %30 : vector<1x256xf32> to vector<5x256xf32>
    %36 = arith.mulf %34, %35 : vector<5x256xf32>
    %37 = vector.broadcast %32 : vector<5x1xf32> to vector<5x256xf32>
    %38 = arith.addf %37, %36 : vector<5x256xf32>
    %39 = vector.extract_strided_slice %38 {offsets = [4, 0], sizes = [1, 256], strides = [1, 1]} : vector<5x256xf32> to vector<1x256xf32>
    %cst_10 = arith.constant 1.000000e-10 : f32
    %40 = vector.broadcast %cst_10 : f32 to vector<1x256xf32>
    %41 = arith.maximumf %39, %40 : vector<1x256xf32>
    %42 = vector.extract_strided_slice %38 {offsets = [0, 0], sizes = [4, 256], strides = [1, 1]} : vector<5x256xf32> to vector<4x256xf32>
    %43 = tpu.reciprocal %41 : vector<1x256xf32> -> vector<1x256xf32>
    %44 = vector.broadcast %43 : vector<1x256xf32> to vector<4x256xf32>
    %45 = arith.mulf %42, %44 : vector<4x256xf32>
    %c0_11 = arith.constant 0 : index
    %c0_12 = arith.constant 0 : index
    %46 = vector.load %arg6[%c0_11, %c0_12] : memref<4x256xf32, #tpu.memory_space<vmem>>, vector<4x256xf32>
    tpu.vector_store %arg6[%c0_11, %c0_12], %45 {strides = array<i32>} : memref<4x256xf32, #tpu.memory_space<vmem>>, vector<4x256xf32>,
    return
  }
  func.func @transform_0(%arg0: i32) -> (i32, i32) {
    %c0_i32 = arith.constant 0 : i32
    %c0_i32_0 = arith.constant 0 : i32
    return %c0_i32, %arg0 : i32, i32
  }
  func.func @transform_1(%arg0: i32) -> (i32, i32) {
    %c0_i32 = arith.constant 0 : i32
    %c0_i32_0 = arith.constant 0 : i32
    %c0_i32_1 = arith.constant 0 : i32
    return %c0_i32, %c0_i32_0 : i32, i32
  }
  func.func @transform_2(%arg0: i32) -> (i32, i32) {
    %c0_i32 = arith.constant 0 : i32
    %c0_i32_0 = arith.constant 0 : i32
    %c0_i32_1 = arith.constant 0 : i32
    return %c0_i32, %c0_i32_0 : i32, i32
  }
  func.func @transform_3(%arg0: i32) -> (i32, i32) {
    %c0_i32 = arith.constant 0 : i32
    %c0_i32_0 = arith.constant 0 : i32
    %c0_i32_1 = arith.constant 0 : i32
    return %c0_i32, %c0_i32_0 : i32, i32
  }
  func.func @transform_4(%arg0: i32) -> (i32, i32) {
    %c0_i32 = arith.constant 0 : i32
    %c0_i32_0 = arith.constant 0 : i32
    %c0_i32_1 = arith.constant 0 : i32
    return %c0_i32, %c0_i32_0 : i32, i32
  }
  func.func @transform_5(%arg0: i32) -> (i32, i32) {
    %c0_i32 = arith.constant 0 : i32
    %c0_i32_0 = arith.constant 0 : i32
    return %c0_i32, %arg0 : i32, i32
  }
}

</mosaic_0001>

<llo_original>
// kernel: tpu_custom_call.1
$region0: #{tpu_custom_call.1}
  #allocation0 [shape = 'u32[]', space=smem, size = 0x4, offset = 0x4, fixed_abs, tag = 'smem constant byte address 0x4 - core index']
  #allocation1 [shape = 'u32[144,128]{1,0:T(1,128)}', space=vmem, size = 0x12000, scoped, tag = 'internal scratch']
  %s0 = inlined_call_operand.vmem [shape: f32[2,256], index: 0, kind: input, shape index: {}]
  %s1 = inlined_call_operand.vmem [shape: f32[8,1], index: 1, kind: input, shape index: {}]
  %s2 = inlined_call_operand.vmem [shape: f32[8,1], index: 2, kind: input, shape index: {}]
  %s3 = inlined_call_operand.vmem [shape: f32[9,16], index: 3, kind: input, shape index: {}]
  %s4 = inlined_call_operand.vmem [shape: f32[5,16], index: 4, kind: input, shape index: {}]
  %s5 = inlined_call_operand.hbm [shape: f32[4,256], index: 5, kind: output, shape index: {}]
  %s6 = sld [smem:[#allocation0]]
  $region30: #{tpu_custom_call.1} parent=0
    _
  %s8 = ssub.s32 1, %s6
  %s9 = scalar_select 0, %s8, %s6
  $region1: #{tpu_custom_call.1} parent=0
    #allocation2 [shape = 'u8[4096]{0}', space=vmem, size = 0x1000, scoped, tag = 'output window, operand 0, single buffered']
    #allocation3 [shape = 's32[1]{0}', space=sflag, size = 0x4, scoped, tag = 'scoped memory for tpu_custom_call.1']
    %10 = vsyncpa [#allocation3], 0
    // Predicated region
    $region2: #{tpu_custom_call.1} parent=1 // pred_check
      _
    $region3: #{tpu_custom_call.1} parent=1 // pred_check_branch
      %12 = sbr.rel (0) target = $region5
    $region4: #{tpu_custom_call.1} parent=1 // pred_region
      _
    $region5: #{tpu_custom_call.1} parent=1 // pred_fallthru
      _
    // Predicated region
    $region6: #{tpu_custom_call.1} parent=1 // pred_check
      _
    $region7: #{tpu_custom_call.1} parent=1 // pred_check_branch
      %14 = sbr.rel (0) target = $region9
    $region8: #{tpu_custom_call.1} parent=1 // pred_region
      _
    $region9: #{tpu_custom_call.1} parent=1 // pred_fallthru
      _
    // Predicated region
    $region10: #{tpu_custom_call.1} parent=1 // pred_check
      _
    $region11: #{tpu_custom_call.1} parent=1 // pred_check_branch
      %16 = sbr.rel (0) target = $region13
    $region12: #{tpu_custom_call.1} parent=1 // pred_region
      _
    $region13: #{tpu_custom_call.1} parent=1 // pred_fallthru
      _
    // Predicated region
    $region14: #{tpu_custom_call.1} parent=1 // pred_check
      _
    $region15: #{tpu_custom_call.1} parent=1 // pred_check_branch
      %18 = sbr.rel (0) target = $region17
    $region16: #{tpu_custom_call.1} parent=1 // pred_region
      _
    $region17: #{tpu_custom_call.1} parent=1 // pred_fallthru
      _
    // Predicated region
    $region18: #{tpu_custom_call.1} parent=1 // pred_check
      _
    $region19: #{tpu_custom_call.1} parent=1 // pred_check_branch
      %20 = sbr.rel (0) target = $region21
    $region20: #{tpu_custom_call.1} parent=1 // pred_region
      _
    $region21: #{tpu_custom_call.1} parent=1 // pred_fallthru
      _
    %v21 = vld [vmem:[%s0] sm:$0xf]
    %v22 = vmul.f32 %v21, 2.0
    %v23 = vld [vmem:[%s1] sm:$0xff]
    %v24 = vld [vmem:[%s2] sm:$0xff]
    %v25 = vld [vmem:[%s4] sm:$0x1f]
    %27 = vset.pattern.permute.xlu0 0
    %28 = vperm.xlu0 %27, %v23
    %v29 = vpop.permute.xlu0 %28
    %v32 = vlaneseq
    %v33 = vshrl.u32 %v32, 7
    %v34 = vsub.s32 0, %v33
    %v35 = vrot.slane %v22, %v34
    %v36 = vlaneseq
    %v37 = vshrl.u32 %v36, 7
    %v38 = vsub.s32 2, %v37
    %v39 = vrot.slane %v22, %v38
    %v42 = vlaneseq
    %v43 = vshrl.u32 %v42, 7
    %v44 = vsub.s32 0, %v43
    %v45 = vrot.slane %v35, %v44
    %v46 = vlaneseq
    %v47 = vshrl.u32 %v46, 7
    %v48 = vsub.s32 0, %v47
    %v49 = vrot.slane %v39, %v48
    %v50 = vsub.f32 %v29, %v45
    %v51 = vsub.f32 %v29, %v49
    %v52 = vxor.u32 %v50, 2147483648
    %v53 = vxor.u32 %v51, 2147483648
    %v54 = vmul.f32 %v52, 1.442695
    %v55 = vpow.pop %v54
    %v56 = vmul.f32 %v53, 1.442695
    %v57 = vpow.pop %v56
    %v58 = vadd.f32 %v55, 1.0
    %v59 = vadd.f32 %v57, 1.0
    %v60 = vrcp.pop %v58
    %v61 = vmul.f32 1.0, %v60
    %v62 = vrcp.pop %v59
    %v63 = vmul.f32 1.0, %v62
    %v64 = vlaneseq
    %v65 = vshrl.u32 %v64, 7
    %v66 = vsub.s32 1, %v65
    %v67 = vrot.slane %v22, %v66
    %v68 = vlaneseq
    %v69 = vshrl.u32 %v68, 7
    %v70 = vsub.s32 3, %v69
    %v71 = vrot.slane %v22, %v70
    %v74 = vlaneseq
    %v75 = vshrl.u32 %v74, 7
    %v76 = vsub.s32 1, %v75
    %v77 = vrot.slane %v67, %v76
    %v78 = vlaneseq
    %v79 = vshrl.u32 %v78, 7
    %v80 = vsub.s32 1, %v79
    %v81 = vrot.slane %v71, %v80
    %v82 = vsub.f32 %v29, %v77
    %v83 = vsub.f32 %v29, %v81
    %v84 = vxor.u32 %v82, 2147483648
    %v85 = vxor.u32 %v83, 2147483648
    %v86 = vmul.f32 %v84, 1.442695
    %v87 = vpow.pop %v86
    %v88 = vmul.f32 %v85, 1.442695
    %v89 = vpow.pop %v88
    %v90 = vadd.f32 %v87, 1.0
    %v91 = vadd.f32 %v89, 1.0
    %v92 = vrcp.pop %v90
    %v93 = vmul.f32 1.0, %v92
    %v94 = vrcp.pop %v91
    %v95 = vmul.f32 1.0, %v94
    %v96 = vsub.f32 %v93, %v61
    %v97 = vsub.f32 %v95, %v63
    %99 = vset.pattern.permute.xlu0 0
    %100 = vperm.xlu0 %99, %v24
    %v101 = vpop.permute.xlu0 %100
    %v103 = vmul.f32 %v101, %v96
    %v104 = vmul.f32 %v101, %v97
    %v105 = vadd.f32 %v61, %v103
    %v106 = vadd.f32 %v63, %v104
    %108 = vrot.lane.b32.xlu0 %v25, 120
    %v109 = vpop.permute.xlu0 %108
    %v111 = vsub.f32 %v25, %v109
    %113 = vset.pattern.permute.xlu0 0
    %114 = vperm.xlu0 %113, %v111
    %v115 = vpop.permute.xlu0 %114
    %v117 = vlaneseq
    %v118 = vshrl.u32 %v117, 7
    %v119 = vsub.s32 0, %v118
    %v120 = vrot.slane %v105, %v119
    %v121 = vlaneseq
    %v122 = vshrl.u32 %v121, 7
    %v123 = vsub.s32 0, %v122
    %v124 = vrot.slane %v106, %v123
    %v125 = vmul.f32 %v115, %v120
    %v126 = vmul.f32 %v115, %v124
    %127 = vset.pattern.permute.xlu0 8
    %128 = vperm.xlu0 %127, %v25
    %v129 = vpop.permute.xlu0 %128
    %v131 = vadd.f32 %v129, %v125
    %v132 = vadd.f32 %v129, %v126
    %v133 = vmax.f32 %v131, 1e-10
    %v134 = vmax.f32 %v132, 1e-10
    %v135 = vrcp.pop %v133
    %v136 = vrcp.pop %v134
    %v137 = vlaneseq
    %v138 = vshrl.u32 %v137, 7
    %v139 = vsub.s32 4, %v138
    %v140 = vrot.slane %v135, %v139
    %v141 = vlaneseq
    %v142 = vshrl.u32 %v141, 7
    %v143 = vsub.s32 4, %v142
    %v144 = vrot.slane %v136, %v143
    %v145 = vmul.f32 %v131, %v140
    %v146 = vmul.f32 %v132, %v144
    %v149 = vcombine.low %v145, %v146
    %151 = vst [vmem:[#allocation2] sm:$0xff] %v149
    // Predicated region
    $region22: #{tpu_custom_call.1} parent=1 // pred_check
      _
    $region23: #{tpu_custom_call.1} parent=1 // pred_check_branch
      %153 = sbr.rel (0) target = $region25
    $region24: #{tpu_custom_call.1} parent=1 // pred_region
      %s155 = ssub.s32 128, 128
      %156 = vsyncadd [#allocation3], %s155
      %s158 = sshll.u32 [#allocation2], 4
      %s159 = int_to_ptr.vmem [resolvable:$true] %s158
      %161 = dma.vmem_to_hbm [thread:$0]  %s159, 128, %s5, [#allocation3]
    $region25: #{tpu_custom_call.1} parent=1 // pred_fallthru
      _
    // Predicated region
    $region26: #{tpu_custom_call.1} parent=1 // pred_check
      _
    $region27: #{tpu_custom_call.1} parent=1 // pred_check_branch
      %163 = sbr.rel (0) target = $region29
    $region28: #{tpu_custom_call.1} parent=1 // pred_region
      %164 = dma.done [#allocation3], 128
    $region29: #{tpu_custom_call.1} parent=1 // pred_fallthru
      _
    %165 = vsyncpa [#allocation3], 1

</llo_original>
